<compile_context>
chip_gen: v5e
topology: v5e:2x2
jax: 0.10.0
libtpu: 0.0.40
codegen_flags: <defaults>
</compile_context>

<pallas_src>
import functools

import jax
import jax.numpy as jnp
from jax.experimental import pallas as pl
from jax.experimental.pallas import tpu as pltpu


# ---------------------------------------------------------------------------
# Kernel
# ---------------------------------------------------------------------------
def dueling_q_kernel(x_ref, w1_ref, b1_ref, w2_ref, b2_ref, wh_ref, bh_ref,
                     o_ref):
    x = x_ref[...]                                               # [TB, S]

    # Shared trunk: fc1 -> ReLU (f32 accumulation, bias add in f32).
    h = jnp.dot(x, w1_ref[...], preferred_element_type=jnp.float32)
    h = jnp.maximum(h + b1_ref[...], 0.0)                        # [TB, fc1]

    # Fused fc2 (value | advantage streams) -> ReLU.
    h = h.astype(w2_ref.dtype)
    h2 = jnp.dot(h, w2_ref[...], preferred_element_type=jnp.float32)
    h2 = jnp.maximum(h2 + b2_ref[...], 0.0)                      # [TB, fc2]

    # Fused block-diagonal heads: col 0 = V(s), cols 1: = A(s, a).
    h2 = h2.astype(wh_ref.dtype)
    head = jnp.dot(h2, wh_ref[...], preferred_element_type=jnp.float32)
    head = head + bh_ref[...]                                    # [TB, 1+A]

    v = head[:, :1]                                              # [TB, 1]
    a = head[:, 1:]                                              # [TB, A]

    # Q(s, a) = V(s) + (A(s, a) - mean_a A(s, a))   (XLU cross-lane reduce)
    a_mean = jnp.mean(a, axis=1, keepdims=True)
    o_ref[...] = (v + (a - a_mean)).astype(o_ref.dtype)


# ---------------------------------------------------------------------------
# One-time parameter preparation (hoisted out of the per-call path)
# ---------------------------------------------------------------------------
def prepare_params(params, compute_dtype=jnp.bfloat16):
    """Fuse / transpose / cast PyTorch-convention (w:[out,in], b:[out]) params.

    Returns a dict of arrays ready to feed straight into the kernel:
      w1 : [state_size, fc1]         b1 : [1, fc1]
      w2 : [fc1, fc2]                b2 : [1, fc2]       (value | advantage)
      wh : [fc2, 1 + action_size]    bh : [1, 1 + action_size]  (block-diag)
    Biases stay f32 (added post-matmul to the f32 accumulator).
    """
    w1, b1 = params["fc1"]
    w2v, b2v = params["fc2_value"]
    wv, bv = params["value"]
    w2a, b2a = params["fc2_advantage"]
    wa, ba = params["advantage"]

    n_value = w2v.shape[0]
    n_adv = w2a.shape[0]
    action_size = wa.shape[0]

    w1_t = jnp.asarray(w1, jnp.float32).T                       # [S, fc1]
    b1_r = jnp.asarray(b1, jnp.float32).reshape(1, -1)

    # Fused fc2: [fc1, n_value + n_adv]
    w2_t = jnp.concatenate(
        [jnp.asarray(w2v, jnp.float32).T, jnp.asarray(w2a, jnp.float32).T],
        axis=1)
    b2_r = jnp.concatenate(
        [jnp.asarray(b2v, jnp.float32), jnp.asarray(b2a, jnp.float32)]
    ).reshape(1, -1)

    # Block-diagonal head: [fc2, 1 + action_size]
    wh = jnp.zeros((n_value + n_adv, 1 + action_size), jnp.float32)
    wh = wh.at[:n_value, :1].set(jnp.asarray(wv, jnp.float32).T)
    wh = wh.at[n_value:, 1:].set(jnp.asarray(wa, jnp.float32).T)
    bh = jnp.concatenate(
        [jnp.asarray(bv, jnp.float32), jnp.asarray(ba, jnp.float32)]
    ).reshape(1, -1)

    return {
        "w1": w1_t.astype(compute_dtype),
        "b1": b1_r,
        "w2": w2_t.astype(compute_dtype),
        "b2": b2_r,
        "wh": wh.astype(compute_dtype),
        "bh": bh,
    }


# ---------------------------------------------------------------------------
# Forward wrapper
# ---------------------------------------------------------------------------
@functools.partial(jax.jit, static_argnames=("max_batch_tile",))
def dueling_q_forward(state, prep, max_batch_tile=512):
    """state: [B, state_size]; prep: output of prepare_params."""
    w1, b1, w2, b2, wh, bh = (prep[k] for k in ("w1", "b1", "w2", "b2",
                                                "wh", "bh"))
    compute_dtype = w1.dtype
    B, S = state.shape
    action_size = wh.shape[1] - 1

    x = state.astype(compute_dtype)

    # Batch tiling: one block at small B; large tiles (multiple of 8) at big B
    # so BlockSpec double-buffers the only HBM-relevant tensors (x, Q) and the
    # parallel grid axis shards the batch across v7x's two TensorCores.
    tb = B if B <= max_batch_tile else max_batch_tile
    grid = (pl.cdiv(B, tb),)

    def resident(arr):
        # Weights/biases: same block every grid step (stay resident in VMEM).
        return pl.BlockSpec(arr.shape, lambda i: (0, 0))

    return pl.pallas_call(
        dueling_q_kernel,
        out_shape=jax.ShapeDtypeStruct((B, action_size), jnp.float32),
        grid=grid,
        in_specs=[
            pl.BlockSpec((tb, S), lambda i: (i, 0)),             # x (batch-tiled)
            resident(w1), resident(b1),
            resident(w2), resident(b2),
            resident(wh), resident(bh),
        ],
        out_specs=pl.BlockSpec((tb, action_size), lambda i: (i, 0)),
        compiler_params=pltpu.CompilerParams(
            dimension_semantics=("parallel",)),
    )(x, w1, b1, w2, b2, wh, bh)
    # TODO(synk): output last dim (action_size=4) is a masked lane store; a
    # lane-padded [B, 128] output slab would help only if the kernel becomes
    # store-bound at very large B.


# ---------------------------------------------------------------------------
# Init + pure-JAX reference (PyTorch nn.Linear convention: w [out, in])
# ---------------------------------------------------------------------------
def init_params(key, state_size, action_size, fc1_units=64, fc2_units=64):
    n_value = fc2_units // 2
    n_adv = fc2_units - n_value
    shapes = {
        "fc1": (fc1_units, state_size),
        "fc2_value": (n_value, fc1_units),
        "value": (1, n_value),
        "fc2_advantage": (n_adv, fc1_units),
        "advantage": (action_size, n_adv),
    }
    params = {}
    for name, (out_f, in_f) in shapes.items():
        key, kw, kb = jax.random.split(key, 3)
        bound = 1.0 / jnp.sqrt(jnp.float32(in_f))
        w = jax.random.uniform(kw, (out_f, in_f), jnp.float32, -bound, bound)
        b = jax.random.uniform(kb, (out_f,), jnp.float32, -bound, bound)
        params[name] = (w, b)
    return params


def reference_forward(state, params):
    def lin(x, name):
        w, b = params[name]
        return x @ w.T + b
    h = jax.nn.relu(lin(state, "fc1"))
    v = lin(jax.nn.relu(lin(h, "fc2_value")), "value")
    a = lin(jax.nn.relu(lin(h, "fc2_advantage")), "advantage")
    return v + (a - jnp.mean(a, axis=1, keepdims=True))


# ---------------------------------------------------------------------------
# Test
# ---------------------------------------------------------------------------
if __name__ == "__main__":
    key = jax.random.PRNGKey(0)
    state_size, action_size, batch = 8, 4, 2

    k_params, k_state = jax.random.split(key)
    params = init_params(k_params, state_size, action_size)
    state = jax.random.normal(k_state, (batch, state_size), jnp.float32)

    ref = reference_forward(state, params)

    # f32 path: tight numerical validation of the fused kernel structure.
    prep_f32 = prepare_params(params, compute_dtype=jnp.float32)
    out_f32 = jax.block_until_ready(dueling_q_forward(state, prep_f32))
    assert out_f32.shape == (batch, action_size)
    assert jnp.allclose(out_f32, ref, atol=1e-5, rtol=1e-5), (out_f32, ref)

    # bf16 path (default / MXU-native on v6e & v7x): looser tolerance.
    prep_bf16 = prepare_params(params, compute_dtype=jnp.bfloat16)
    out_bf16 = jax.block_until_ready(dueling_q_forward(state, prep_bf16))
    assert out_bf16.shape == (batch, action_size)
    assert jnp.allclose(out_bf16, ref, atol=5e-2, rtol=5e-2), (out_bf16, ref)

    print("KERNEL_OK")
</pallas_src>

<mosaic_0001>
module attributes {stable_mosaic.version = 11 : i64} {
  func.func @dueling_q_kernel(%arg0: i32, %arg1: memref<2x8xf32, #tpu.memory_space<vmem>>, %arg2: memref<8x64xf32, #tpu.memory_space<vmem>>, %arg3: memref<1x64xf32, #tpu.memory_space<vmem>>, %arg4: memref<64x64xf32, #tpu.memory_space<vmem>>, %arg5: memref<1x64xf32, #tpu.memory_space<vmem>>, %arg6: memref<64x5xf32, #tpu.memory_space<vmem>>, %arg7: memref<1x5xf32, #tpu.memory_space<vmem>>, %arg8: memref<2x4xf32, #tpu.memory_space<vmem>>) attributes {dimension_semantics = [#tpu.dimension_semantics<parallel>], iteration_bounds = array<i64: 1>, scalar_prefetch = 0 : i64, scratch_operands = 0 : i64, tpu.core_type = #tpu.core_type<tc>, window_params = [{transform_indices = @transform_0, window_bounds = array<i64: 2, 8>}, {pipeline_mode = #tpu.pipeline_mode<synchronous>, transform_indices = @transform_1, window_bounds = array<i64: 8, 64>}, {pipeline_mode = #tpu.pipeline_mode<synchronous>, transform_indices = @transform_2, window_bounds = array<i64: 1, 64>}, {pipeline_mode = #tpu.pipeline_mode<synchronous>, transform_indices = @transform_3, window_bounds = array<i64: 64, 64>}, {pipeline_mode = #tpu.pipeline_mode<synchronous>, transform_indices = @transform_4, window_bounds = array<i64: 1, 64>}, {pipeline_mode = #tpu.pipeline_mode<synchronous>, transform_indices = @transform_5, window_bounds = array<i64: 64, 5>}, {pipeline_mode = #tpu.pipeline_mode<synchronous>, transform_indices = @transform_6, window_bounds = array<i64: 1, 5>}, {transform_indices = @transform_7, window_bounds = array<i64: 2, 4>}]} {
    %c0 = arith.constant 0 : index
    %c0_0 = arith.constant 0 : index
    %0 = vector.load %arg1[%c0, %c0_0] : memref<2x8xf32, #tpu.memory_space<vmem>>, vector<2x8xf32>
    %c0_1 = arith.constant 0 : index
    %c0_2 = arith.constant 0 : index
    %1 = vector.load %arg2[%c0_1, %c0_2] : memref<8x64xf32, #tpu.memory_space<vmem>>, vector<8x64xf32>
    %cst = arith.constant dense<0.000000e+00> : vector<2x64xf32>
    %2 = tpu.matmul %0, %1, %cst {dimension_numbers = #tpu.dot_dimension_numbers<[1], [0], [0], [1], [0, 0, 1, 1], [], []>} : vector<2x8xf32>, vector<8x64xf32>, vector<2x64xf32> -> vector<2x64xf32>
    %c0_3 = arith.constant 0 : index
    %c0_4 = arith.constant 0 : index
    %3 = vector.load %arg3[%c0_3, %c0_4] : memref<1x64xf32, #tpu.memory_space<vmem>>, vector<1x64xf32>
    %4 = vector.broadcast %3 : vector<1x64xf32> to vector<2x64xf32>
    %5 = arith.addf %2, %4 : vector<2x64xf32>
    %cst_5 = arith.constant 0.000000e+00 : f32
    %6 = vector.broadcast %cst_5 : f32 to vector<2x64xf32>
    %7 = arith.maximumf %5, %6 : vector<2x64xf32>
    %c0_6 = arith.constant 0 : index
    %c0_7 = arith.constant 0 : index
    %8 = vector.load %arg4[%c0_6, %c0_7] : memref<64x64xf32, #tpu.memory_space<vmem>>, vector<64x64xf32>
    %cst_8 = arith.constant dense<0.000000e+00> : vector<2x64xf32>
    %9 = tpu.matmul %7, %8, %cst_8 {dimension_numbers = #tpu.dot_dimension_numbers<[1], [0], [0], [1], [0, 0, 1, 1], [], []>} : vector<2x64xf32>, vector<64x64xf32>, vector<2x64xf32> -> vector<2x64xf32>
    %c0_9 = arith.constant 0 : index
    %c0_10 = arith.constant 0 : index
    %10 = vector.load %arg5[%c0_9, %c0_10] : memref<1x64xf32, #tpu.memory_space<vmem>>, vector<1x64xf32>
    %11 = vector.broadcast %10 : vector<1x64xf32> to vector<2x64xf32>
    %12 = arith.addf %9, %11 : vector<2x64xf32>
    %cst_11 = arith.constant 0.000000e+00 : f32
    %13 = vector.broadcast %cst_11 : f32 to vector<2x64xf32>
    %14 = arith.maximumf %12, %13 : vector<2x64xf32>
    %c0_12 = arith.constant 0 : index
    %c0_13 = arith.constant 0 : index
    %15 = vector.load %arg6[%c0_12, %c0_13] : memref<64x5xf32, #tpu.memory_space<vmem>>, vector<64x5xf32>
    %cst_14 = arith.constant dense<0.000000e+00> : vector<2x5xf32>
    %16 = tpu.matmul %14, %15, %cst_14 {dimension_numbers = #tpu.dot_dimension_numbers<[1], [0], [0], [1], [0, 0, 1, 1], [], []>} : vector<2x64xf32>, vector<64x5xf32>, vector<2x5xf32> -> vector<2x5xf32>
    %c0_15 = arith.constant 0 : index
    %c0_16 = arith.constant 0 : index
    %17 = vector.load %arg7[%c0_15, %c0_16] : memref<1x5xf32, #tpu.memory_space<vmem>>, vector<1x5xf32>
    %18 = vector.broadcast %17 : vector<1x5xf32> to vector<2x5xf32>
    %19 = arith.addf %16, %18 : vector<2x5xf32>
    %20 = vector.extract_strided_slice %19 {offsets = [0, 0], sizes = [2, 1], strides = [1, 1]} : vector<2x5xf32> to vector<2x1xf32>
    %21 = vector.extract_strided_slice %19 {offsets = [0, 1], sizes = [2, 4], strides = [1, 1]} : vector<2x5xf32> to vector<2x4xf32>
    %cst_17 = arith.constant dense<0.000000e+00> : vector<2xf32>
    %22 = vector.multi_reduction <add>, %21, %cst_17 [1] : vector<2x4xf32> to vector<2xf32>
    %23 = vector.shape_cast %22 : vector<2xf32> to vector<2x1xf32>
    %cst_18 = arith.constant 4.000000e+00 : f32
    %24 = vector.broadcast %cst_18 : f32 to vector<2x1xf32>
    %25 = arith.divf %23, %24 : vector<2x1xf32>
    %26 = vector.broadcast %25 : vector<2x1xf32> to vector<2x4xf32>
    %27 = arith.subf %21, %26 : vector<2x4xf32>
    %28 = vector.broadcast %20 : vector<2x1xf32> to vector<2x4xf32>
    %29 = arith.addf %28, %27 : vector<2x4xf32>
    %c0_19 = arith.constant 0 : index
    %c0_20 = arith.constant 0 : index
    %30 = vector.load %arg8[%c0_19, %c0_20] : memref<2x4xf32, #tpu.memory_space<vmem>>, vector<2x4xf32>
    tpu.vector_store %arg8[%c0_19, %c0_20], %29 {strides = array<i32>} : memref<2x4xf32, #tpu.memory_space<vmem>>, vector<2x4xf32>,
    return
  }
  func.func @transform_0(%arg0: i32) -> (i32, i32) {
    %c0_i32 = arith.constant 0 : i32
    %c0_i32_0 = arith.constant 0 : i32
    return %arg0, %c0_i32 : i32, i32
  }
  func.func @transform_1(%arg0: i32) -> (i32, i32) {
    %c0_i32 = arith.constant 0 : i32
    %c0_i32_0 = arith.constant 0 : i32
    %c0_i32_1 = arith.constant 0 : i32
    return %c0_i32, %c0_i32_0 : i32, i32
  }
  func.func @transform_2(%arg0: i32) -> (i32, i32) {
    %c0_i32 = arith.constant 0 : i32
    %c0_i32_0 = arith.constant 0 : i32
    %c0_i32_1 = arith.constant 0 : i32
    return %c0_i32, %c0_i32_0 : i32, i32
  }
  func.func @transform_3(%arg0: i32) -> (i32, i32) {
    %c0_i32 = arith.constant 0 : i32
    %c0_i32_0 = arith.constant 0 : i32
    %c0_i32_1 = arith.constant 0 : i32
    return %c0_i32, %c0_i32_0 : i32, i32
  }
  func.func @transform_4(%arg0: i32) -> (i32, i32) {
    %c0_i32 = arith.constant 0 : i32
    %c0_i32_0 = arith.constant 0 : i32
    %c0_i32_1 = arith.constant 0 : i32
    return %c0_i32, %c0_i32_0 : i32, i32
  }
  func.func @transform_5(%arg0: i32) -> (i32, i32) {
    %c0_i32 = arith.constant 0 : i32
    %c0_i32_0 = arith.constant 0 : i32
    %c0_i32_1 = arith.constant 0 : i32
    return %c0_i32, %c0_i32_0 : i32, i32
  }
  func.func @transform_6(%arg0: i32) -> (i32, i32) {
    %c0_i32 = arith.constant 0 : i32
    %c0_i32_0 = arith.constant 0 : i32
    %c0_i32_1 = arith.constant 0 : i32
    return %c0_i32, %c0_i32_0 : i32, i32
  }
  func.func @transform_7(%arg0: i32) -> (i32, i32) {
    %c0_i32 = arith.constant 0 : i32
    %c0_i32_0 = arith.constant 0 : i32
    return %arg0, %c0_i32 : i32, i32
  }
}

</mosaic_0001>

<llo_original>
// kernel: dueling_q_forward.1
$region0: #{dueling_q_forward.1}
  #allocation0 [shape = 'u32[]', space=smem, size = 0x4, offset = 0x4, fixed_abs, tag = 'smem constant byte address 0x4 - core index']
  #allocation1 [shape = 'u32[72,128]{1,0:T(1,128)}', space=vmem, size = 0x9000, scoped, tag = 'internal scratch']
  %s0 = inlined_call_operand.vmem [shape: f32[2,8], index: 0, kind: input, shape index: {}]
  %s1 = inlined_call_operand.vmem [shape: f32[8,64], index: 1, kind: input, shape index: {}]
  %s2 = inlined_call_operand.vmem [shape: f32[1,64], index: 2, kind: input, shape index: {}]
  %s3 = inlined_call_operand.vmem [shape: f32[64,64], index: 3, kind: input, shape index: {}]
  %s4 = inlined_call_operand.vmem [shape: f32[1,64], index: 4, kind: input, shape index: {}]
  %s5 = inlined_call_operand.vmem [shape: f32[64,5], index: 5, kind: input, shape index: {}]
  %s6 = inlined_call_operand.hbm [shape: f32[1,5], index: 6, kind: input, shape index: {}]
  %s7 = inlined_call_operand.hbm [shape: f32[2,4], index: 7, kind: output, shape index: {}]
  %s8 = sld [smem:[#allocation0]]
  $region42: #{dueling_q_forward.1} parent=0
    _
  %s10 = ssub.s32 1, %s8
  %s11 = scalar_select 0, %s10, %s8
  $region1: #{dueling_q_forward.1} parent=0
    #allocation2 [shape = 'u8[512]{0}', space=vmem, size = 0x400, scoped, tag = 'input window, operand 6, single buffered']
    #allocation3 [shape = 's32[1]{0}', space=sflag, size = 0x4, scoped, tag = 'scoped memory for dueling_q_forward.1']
    #allocation4 [shape = 's32[1]{0}', space=sflag, size = 0x4, scoped, tag = 'scoped memory for dueling_q_forward.1']
    #allocation5 [shape = 'u8[1024]{0}', space=vmem, size = 0x400, scoped, tag = 'output window, operand 0, single buffered']
    %12 = vsyncpa [#allocation3], 0
    %13 = vsyncpa [#allocation4], 0
    // Predicated region
    $region2: #{dueling_q_forward.1} parent=1 // pred_check
      _
    $region3: #{dueling_q_forward.1} parent=1 // pred_check_branch
      %15 = sbr.rel (0) target = $region5
    $region4: #{dueling_q_forward.1} parent=1 // pred_region
      _
    $region5: #{dueling_q_forward.1} parent=1 // pred_fallthru
      _
    // Predicated region
    $region6: #{dueling_q_forward.1} parent=1 // pred_check
      _
    $region7: #{dueling_q_forward.1} parent=1 // pred_check_branch
      %17 = sbr.rel (0) target = $region9
    $region8: #{dueling_q_forward.1} parent=1 // pred_region
      _
    $region9: #{dueling_q_forward.1} parent=1 // pred_fallthru
      _
    // Predicated region
    $region10: #{dueling_q_forward.1} parent=1 // pred_check
      _
    $region11: #{dueling_q_forward.1} parent=1 // pred_check_branch
      %19 = sbr.rel (0) target = $region13
    $region12: #{dueling_q_forward.1} parent=1 // pred_region
      _
    $region13: #{dueling_q_forward.1} parent=1 // pred_fallthru
      _
    // Predicated region
    $region14: #{dueling_q_forward.1} parent=1 // pred_check
      _
    $region15: #{dueling_q_forward.1} parent=1 // pred_check_branch
      %21 = sbr.rel (0) target = $region17
    $region16: #{dueling_q_forward.1} parent=1 // pred_region
      _
    $region17: #{dueling_q_forward.1} parent=1 // pred_fallthru
      _
    // Predicated region
    $region18: #{dueling_q_forward.1} parent=1 // pred_check
      _
    $region19: #{dueling_q_forward.1} parent=1 // pred_check_branch
      %23 = sbr.rel (0) target = $region21
    $region20: #{dueling_q_forward.1} parent=1 // pred_region
      _
    $region21: #{dueling_q_forward.1} parent=1 // pred_fallthru
      _
    // Predicated region
    $region22: #{dueling_q_forward.1} parent=1 // pred_check
      _
    $region23: #{dueling_q_forward.1} parent=1 // pred_check_branch
      %25 = sbr.rel (0) target = $region25
    $region24: #{dueling_q_forward.1} parent=1 // pred_region
      _
    $region25: #{dueling_q_forward.1} parent=1 // pred_fallthru
      _
    // Predicated region
    $region26: #{dueling_q_forward.1} parent=1 // pred_check
      _
    $region27: #{dueling_q_forward.1} parent=1 // pred_check_branch
      %27 = sbr.rel (0) target = $region29
    $region28: #{dueling_q_forward.1} parent=1 // pred_region
      %29 = vsyncadd [#allocation3], 0
      %s31 = sshll.u32 %s6, 4
      %s32 = int_to_ptr.hbm [resolvable:$true] %s31
      %s33 = sshll.u32 [#allocation2], 4
      %s34 = int_to_ptr.vmem [resolvable:$true] %s33
      %36 = dma.hbm_to_vmem [thread:$0]  %s32, 16, %s34, [#allocation3]
    $region29: #{dueling_q_forward.1} parent=1 // pred_fallthru
      _
    // Predicated region
    $region30: #{dueling_q_forward.1} parent=1 // pred_check
      _
    $region31: #{dueling_q_forward.1} parent=1 // pred_check_branch
      %38 = sbr.rel (0) target = $region33
    $region32: #{dueling_q_forward.1} parent=1 // pred_region
      %40 = dma.done [#allocation3], 16
    $region33: #{dueling_q_forward.1} parent=1 // pred_fallthru
      _
    %v41 = vld [vmem:[%s0] sm:$0x3]
    %v42 = vld [vmem:[%s1] sm:$0xff]
    %v43 = vld [vmem:[%s2] sm:$0x1]
    %v45 = vperm.slane %v43, 0
    %vm47 = vcmask 64512
    %v49 = vsel %vm47, %v41, 0
    %51 = vmatpush.msra.mxu0 0.0
    %52 = vmatpush.msra.mxu0 0.0
    %53 = vmatpush.msra.mxu0 0.0
    %54 = vmatpush.msra.mxu0 0.0
    %55 = vmatpush.msra.mxu0 0.0
    %56 = vmatpush.msra.mxu0 0.0
    %57 = vmatpush.msra.mxu0 0.0
    %58 = vmatpush.msra.mxu0 0.0
    %59 = vmatpush.msra.mxu0 0.0
    %60 = vmatpush.msra.mxu0 0.0
    %61 = vmatpush.msra.mxu0 0.0
    %62 = vmatpush.msra.mxu0 0.0
    %63 = vmatpush.msra.mxu0 0.0
    %64 = vmatpush.msra.mxu0 0.0
    %65 = vmatpush.msra.mxu0 0.0
    %66 = vmatpush.msra.mxu0 %v42
    %67 = vmatmul.f32.gmra.mxu0 %v49
    %v68 = vpop.f32.mrf.mxu0
    %v69 = vadd.f32 %v45, %v68
    %70 = vdwg.mxu0
    %v71 = vmax.f32 %v69, 0.0
    %v72 = vld [vmem:[%s3] sm:$0xff]
    %v73 = vld [vmem:[%s3 + $0x8] sm:$0xff]
    %v74 = vld [vmem:[%s3 + $0x10] sm:$0xff]
    %v75 = vld [vmem:[%s3 + $0x18] sm:$0xff]
    %v76 = vld [vmem:[%s3 + $0x20] sm:$0xff]
    %v77 = vld [vmem:[%s3 + $0x28] sm:$0xff]
    %v78 = vld [vmem:[%s3 + $0x30] sm:$0xff]
    %v79 = vld [vmem:[%s3 + $0x38] sm:$0xff]
    %v80 = vld [vmem:[%s4] sm:$0x1]
    %v82 = vperm.slane %v80, 0
    %vm84 = vcmask 523264
    %v86 = vsel %vm84, %v71, 0
    %88 = vmatpush.msra.mxu0 0.0
    %89 = vmatpush.msra.mxu0 0.0
    %90 = vmatpush.msra.mxu0 0.0
    %91 = vmatpush.msra.mxu0 0.0
    %92 = vmatpush.msra.mxu0 0.0
    %93 = vmatpush.msra.mxu0 0.0
    %94 = vmatpush.msra.mxu0 0.0
    %95 = vmatpush.msra.mxu0 0.0
    %96 = vmatpush.msra.mxu0 %v79
    %97 = vmatpush.msra.mxu0 %v78
    %98 = vmatpush.msra.mxu0 %v77
    %99 = vmatpush.msra.mxu0 %v76
    %100 = vmatpush.msra.mxu0 %v75
    %101 = vmatpush.msra.mxu0 %v74
    %102 = vmatpush.msra.mxu0 %v73
    %103 = vmatpush.msra.mxu0 %v72
    %104 = vmatmul.f32.gmra.mxu0 %v86
    %v105 = vpop.f32.mrf.mxu0
    %v106 = vadd.f32 %v82, %v105
    %107 = vdwg.mxu0
    %v108 = vmax.f32 %v106, 0.0
    %v109 = vld [vmem:[%s5] sm:$0xff]
    %v110 = vld [vmem:[%s5 + $0x8] sm:$0xff]
    %v111 = vld [vmem:[%s5 + $0x10] sm:$0xff]
    %v112 = vld [vmem:[%s5 + $0x18] sm:$0xff]
    %v113 = vld [vmem:[%s5 + $0x20] sm:$0xff]
    %v114 = vld [vmem:[%s5 + $0x28] sm:$0xff]
    %v115 = vld [vmem:[%s5 + $0x30] sm:$0xff]
    %v116 = vld [vmem:[%s5 + $0x38] sm:$0xff]
    %v117 = vld [vmem:[#allocation2] sm:$0x1]
    %v119 = vperm.slane %v117, 0
    %v122 = vsel %vm84, %v108, 0
    %124 = vmatpush.msra.mxu0 0.0
    %125 = vmatpush.msra.mxu0 0.0
    %126 = vmatpush.msra.mxu0 0.0
    %127 = vmatpush.msra.mxu0 0.0
    %128 = vmatpush.msra.mxu0 0.0
    %129 = vmatpush.msra.mxu0 0.0
    %130 = vmatpush.msra.mxu0 0.0
    %131 = vmatpush.msra.mxu0 0.0
    %132 = vmatpush.msra.mxu0 %v116
    %133 = vmatpush.msra.mxu0 %v115
    %134 = vmatpush.msra.mxu0 %v114
    %135 = vmatpush.msra.mxu0 %v113
    %136 = vmatpush.msra.mxu0 %v112
    %137 = vmatpush.msra.mxu0 %v111
    %138 = vmatpush.msra.mxu0 %v110
    %139 = vmatpush.msra.mxu0 %v109
    %140 = vmatmul.f32.gmra.mxu0 %v122
    %v141 = vpop.f32.mrf.mxu0
    %v142 = vadd.f32 %v119, %v141
    %143 = vdwg.mxu0
    %145 = vrot.lane.b32.xlu0 %v142, 127
    %v146 = vpop.permute.xlu0 %145
    %vm148 = vcmask 25600
    %v149 = vsel %vm148, %v146, 0.0
    %150 = vadd.xlane.f32.xlu0 %v149
    %v151 = vpop.xlane.xlu0 %150
    %v152 = vrcp.pop 4.0
    %v153 = vmul.f32 4.0, %v152
    %v154 = vsub.f32 1.0, %v153
    %v155 = vmul.f32 %v152, %v154
    %v156 = vadd.f32 %v152, %v155
    %vm157 = vweird.f32 %v152
    %v158 = vsel %vm157, %v152, %v156
    %v159 = vmul.f32 %v151, %v158
    %v160 = vsub.f32 %v142, %v159
    %161 = vset.pattern.permute.xlu0 0
    %162 = vperm.xlu0 %161, %v142
    %v163 = vpop.permute.xlu0 %162
    %v165 = vadd.f32 %v163, %v160
    %167 = vrot.lane.b32.xlu0 %v165, 127
    %v168 = vpop.permute.xlu0 %167
    %170 = vst.msk [vmem:[#allocation5] sm:$0x3] %vm148, %v168
    // Predicated region
    $region34: #{dueling_q_forward.1} parent=1 // pred_check
      _
    $region35: #{dueling_q_forward.1} parent=1 // pred_check_branch
      %172 = sbr.rel (0) target = $region37
    $region36: #{dueling_q_forward.1} parent=1 // pred_region
      %174 = vsyncadd [#allocation4], 0
      %s176 = sshll.u32 [#allocation5], 4
      %s177 = int_to_ptr.vmem [resolvable:$true] %s176
      %s178 = sshll.u32 %s7, 4
      %s179 = int_to_ptr.hbm [resolvable:$true] %s178
      %181 = dma.vmem_to_hbm [thread:$0]  %s177, 32, %s179, [#allocation4]
    $region37: #{dueling_q_forward.1} parent=1 // pred_fallthru
      _
    // Predicated region
    $region38: #{dueling_q_forward.1} parent=1 // pred_check
      _
    $region39: #{dueling_q_forward.1} parent=1 // pred_check_branch
      %183 = sbr.rel (0) target = $region41
    $region40: #{dueling_q_forward.1} parent=1 // pred_region
      %185 = dma.done [#allocation4], 32
    $region41: #{dueling_q_forward.1} parent=1 // pred_fallthru
      _
    %186 = vsyncpa [#allocation3], 1
    %187 = vsyncpa [#allocation4], 1

</llo_original>
